<compile_context>
chip_gen: v5e
topology: v5e:2x2
jax: 0.10.0
libtpu: 0.0.40
codegen_flags: <defaults>
</compile_context>

<pallas_src>
import functools

import jax
import jax.numpy as jnp
from jax import lax
from jax.experimental import pallas as pl
from jax.experimental.pallas import tpu as pltpu

HIDDEN = 128        # shared-MLP width (nn.Linear(input_dim, 128))
HEAD = 128          # fused head padded to a full 128-lane slab
MAX_TILE_B = 128    # rows per grid step for large batches


# ----------------------------------------------------------------------------
# Kernel
# ----------------------------------------------------------------------------
def _actor_critic_kernel(x_ref, w1_ref, w2_ref, wh_ref, b_ref, out_ref, *,
                         n_actions, softmax):
    """Shared Tanh-MLP + fused (actor|critic) head -> one lane-dense slab."""
    x = x_ref[...]

    # Packed biases: [b1 (128) | b2 (128) | head bias padded to 128].
    b1 = b_ref[:, 0:HIDDEN]
    b2 = b_ref[:, HIDDEN:2 * HIDDEN]
    bh = b_ref[:, 2 * HIDDEN:2 * HIDDEN + HEAD]

    h = jnp.tanh(jnp.dot(x, w1_ref[...], preferred_element_type=jnp.float32) + b1)
    h = jnp.tanh(jnp.dot(h, w2_ref[...], preferred_element_type=jnp.float32) + b2)

    # Fused head: cols [0, A) = actor (logits / action_mean), col A = critic
    # value, cols (A, 128) = exact zeros (zero weights + zero bias).
    head = jnp.dot(h, wh_ref[...], preferred_element_type=jnp.float32) + bh

    if softmax:
        lane = lax.broadcasted_iota(jnp.int32, head.shape, dimension=1)
        is_logit = lane < n_actions
        masked = jnp.where(is_logit, head, -jnp.inf)
        m = jnp.max(masked, axis=-1, keepdims=True)
        e = jnp.exp(masked - m)                       # exp(-inf) == 0 on pad lanes
        s = jnp.sum(e, axis=-1, keepdims=True)
        r = pl.reciprocal(s, approx=True)             # EUP vrcp slot (nearly free)
        r = r * (2.0 - s * r)                         # one Newton step -> f32 accuracy
        head = jnp.where(is_logit, e * r, head)       # [probs | value | zeros]

    out_ref[...] = head


# ----------------------------------------------------------------------------
# pallas_call runner
# ----------------------------------------------------------------------------
def _run(x, packed, *, n_actions, softmax):
    B, D = x.shape
    tile_b = B if B <= MAX_TILE_B else MAX_TILE_B
    grid = (pl.cdiv(B, tile_b),)

    kernel = functools.partial(_actor_critic_kernel,
                               n_actions=n_actions, softmax=softmax)

    return pl.pallas_call(
        kernel,
        out_shape=jax.ShapeDtypeStruct((B, HEAD), jnp.float32),
        grid_spec=pltpu.PrefetchScalarGridSpec(
            num_scalar_prefetch=0,
            grid=grid,
            in_specs=[
                pl.BlockSpec((tile_b, D), lambda i: (i, 0)),            # activations
                pl.BlockSpec((D, HIDDEN), lambda i: (0, 0)),            # w1 (resident)
                pl.BlockSpec((HIDDEN, HIDDEN), lambda i: (0, 0)),       # w2 (resident)
                pl.BlockSpec((HIDDEN, HEAD), lambda i: (0, 0)),         # fused head W
                pl.BlockSpec((1, 2 * HIDDEN + HEAD), lambda i: (0, 0)), # packed biases
            ],
            out_specs=pl.BlockSpec((tile_b, HEAD), lambda i: (i, 0)),
        ),
        compiler_params=pltpu.CompilerParams(
            dimension_semantics=("parallel",)),  # shards batch across TCs on v7x
    )(x, packed["w1"], packed["w2"], packed["wh"], packed["b"])


# ----------------------------------------------------------------------------
# Wrappers (slice the lane-dense slab back into the module's outputs)
# ----------------------------------------------------------------------------
@functools.partial(jax.jit, static_argnames=("n_actions",))
def actor_critic_discrete(x, packed, n_actions):
    out = _run(x, packed, n_actions=n_actions, softmax=True)
    probs = out[:, :n_actions]
    value = out[:, n_actions:n_actions + 1]
    return probs, value


@functools.partial(jax.jit, static_argnames=("n_actions",))
def actor_critic_continuous(x, packed, n_actions):
    out = _run(x, packed, n_actions=n_actions, softmax=False)
    mean = out[:, :n_actions]
    value = out[:, n_actions:n_actions + 1]
    # std = exp(log_std) is input-independent -> precomputed at packing time.
    std = jnp.broadcast_to(packed["std_row"], mean.shape)
    return (mean, std), value


# ----------------------------------------------------------------------------
# Parameter packing (done once per parameter set, outside the hot path)
# ----------------------------------------------------------------------------
def _pack_head(w_actor, b_actor, w_critic, b_critic):
    A = w_actor.shape[1]
    assert A + 1 <= HEAD, "n_actions + 1 must fit in the 128-lane head slab"
    wh = jnp.zeros((HIDDEN, HEAD), jnp.float32)
    wh = wh.at[:, :A].set(w_actor).at[:, A].set(w_critic[:, 0])
    bh = jnp.zeros((1, HEAD), jnp.float32)
    bh = bh.at[:, :A].set(b_actor).at[:, A].set(b_critic[:, 0])
    return wh, bh


def pack_params_discrete(p):
    wh, bh = _pack_head(p["wa"], p["ba"], p["wc"], p["bc"])
    b = jnp.concatenate([p["b1"], p["b2"], bh], axis=1)  # (1, 384)
    return dict(w1=p["w1"], w2=p["w2"], wh=wh, b=b)


def pack_params_continuous(p):
    wh, bh = _pack_head(p["wm"], p["bm"], p["wc"], p["bc"])
    b = jnp.concatenate([p["b1"], p["b2"], bh], axis=1)  # (1, 384)
    std_row = jnp.exp(p["log_std"])                      # hoisted out of the kernel
    return dict(w1=p["w1"], w2=p["w2"], wh=wh, b=b, std_row=std_row)


# ----------------------------------------------------------------------------
# Deterministic parameter init (mimics nn.Linear default U(-1/sqrt(in), 1/sqrt(in)))
# ----------------------------------------------------------------------------
def _linear_init(key, fan_in, fan_out):
    kw, kb = jax.random.split(key)
    bound = 1.0 / jnp.sqrt(fan_in)
    w = jax.random.uniform(kw, (fan_in, fan_out), jnp.float32, -bound, bound)
    b = jax.random.uniform(kb, (1, fan_out), jnp.float32, -bound, bound)
    return w, b


def init_params(key, input_dim, n_actions):
    k1, k2, k3, k4, k5 = jax.random.split(key, 5)
    w1, b1 = _linear_init(k1, input_dim, HIDDEN)
    w2, b2 = _linear_init(k2, HIDDEN, HIDDEN)
    wa, ba = _linear_init(k3, HIDDEN, n_actions)   # actor (discrete)
    wm, bm = _linear_init(k4, HIDDEN, n_actions)   # action_mean (continuous)
    wc, bc = _linear_init(k5, HIDDEN, 1)           # critic
    return dict(
        w1=w1, b1=b1, w2=w2, b2=b2,
        wa=wa, ba=ba,
        wm=wm, bm=bm, log_std=jnp.zeros((1, n_actions), jnp.float32),
        wc=wc, bc=bc,
    )


# ----------------------------------------------------------------------------
# Pure-JAX reference (for sanity checks)
# ----------------------------------------------------------------------------
def reference_discrete(x, p):
    h = jnp.tanh(x @ p["w1"] + p["b1"])
    h = jnp.tanh(h @ p["w2"] + p["b2"])
    probs = jax.nn.softmax(h @ p["wa"] + p["ba"], axis=-1)
    value = h @ p["wc"] + p["bc"]
    return probs, value


def reference_continuous(x, p):
    h = jnp.tanh(x @ p["w1"] + p["b1"])
    h = jnp.tanh(h @ p["w2"] + p["b2"])
    mean = h @ p["wm"] + p["bm"]
    std = jnp.broadcast_to(jnp.exp(p["log_std"]), mean.shape)
    value = h @ p["wc"] + p["bc"]
    return (mean, std), value


if __name__ == "__main__":
    key = jax.random.PRNGKey(0)
    kx, kxb, kp = jax.random.split(key, 3)

    B, INPUT_DIM, N_ACTIONS = 8, 16, 4
    x = jax.random.normal(kx, (B, INPUT_DIM), jnp.float32)
    params = init_params(kp, INPUT_DIM, N_ACTIONS)

    packed_d = pack_params_discrete(params)
    packed_c = pack_params_continuous(params)

    # Discrete action space path: (action_probs, value)  [single grid step]
    probs, value_d = actor_critic_discrete(x, packed_d, N_ACTIONS)
    jax.block_until_ready((probs, value_d))

    # Continuous action space path: ((action_mean, action_std), value)
    (mean, std), value_c = actor_critic_continuous(x, packed_c, N_ACTIONS)
    jax.block_until_ready((mean, std, value_c))

    # Sanity check against pure-JAX reference.
    ref_probs, ref_vd = reference_discrete(x, params)
    (ref_mean, ref_std), ref_vc = reference_continuous(x, params)
    assert jnp.allclose(probs, ref_probs, atol=1e-5, rtol=1e-5)
    assert jnp.allclose(value_d, ref_vd, atol=1e-5, rtol=1e-5)
    assert jnp.allclose(mean, ref_mean, atol=1e-5, rtol=1e-5)
    assert jnp.allclose(std, ref_std, atol=1e-5, rtol=1e-5)
    assert jnp.allclose(value_c, ref_vc, atol=1e-5, rtol=1e-5)
    assert jnp.allclose(jnp.sum(probs, axis=-1), 1.0, atol=1e-5)

    # Larger PPO-style batch exercises the tiled / parallel-grid path
    # (128-row tiles, weights VMEM-resident across grid steps).
    B_BIG = 256
    x_big = jax.random.normal(kxb, (B_BIG, INPUT_DIM), jnp.float32)
    probs_b, value_b = actor_critic_discrete(x_big, packed_d, N_ACTIONS)
    jax.block_until_ready((probs_b, value_b))
    ref_probs_b, ref_vb = reference_discrete(x_big, params)
    assert jnp.allclose(probs_b, ref_probs_b, atol=1e-5, rtol=1e-5)
    assert jnp.allclose(value_b, ref_vb, atol=1e-5, rtol=1e-5)

    # TODO(synk): Categorical/Normal sampling in get_action() is host-side
    # distribution logic, not part of the nn forward pass; omitted here.
    # TODO(synk): optional bf16 weight storage (v5e HBM saving) skipped to keep
    # 1e-5 bit-fidelity against the f32 reference.
    print("KERNEL_OK")
</pallas_src>

<mosaic_0001>
module attributes {stable_mosaic.version = 11 : i64} {
  func.func @_actor_critic_kernel(%arg0: i32, %arg1: memref<8x16xf32, #tpu.memory_space<vmem>>, %arg2: memref<16x128xf32, #tpu.memory_space<vmem>>, %arg3: memref<128x128xf32, #tpu.memory_space<vmem>>, %arg4: memref<128x128xf32, #tpu.memory_space<vmem>>, %arg5: memref<1x384xf32, #tpu.memory_space<vmem>>, %arg6: memref<8x128xf32, #tpu.memory_space<vmem>>) attributes {dimension_semantics = [#tpu.dimension_semantics<parallel>], iteration_bounds = array<i64: 1>, scalar_prefetch = 0 : i64, scratch_operands = 0 : i64, tpu.core_type = #tpu.core_type<tc>, window_params = [{transform_indices = @transform_0, window_bounds = array<i64: 8, 16>}, {pipeline_mode = #tpu.pipeline_mode<synchronous>, transform_indices = @transform_1, window_bounds = array<i64: 16, 128>}, {pipeline_mode = #tpu.pipeline_mode<synchronous>, transform_indices = @transform_2, window_bounds = array<i64: 128, 128>}, {pipeline_mode = #tpu.pipeline_mode<synchronous>, transform_indices = @transform_3, window_bounds = array<i64: 128, 128>}, {pipeline_mode = #tpu.pipeline_mode<synchronous>, transform_indices = @transform_4, window_bounds = array<i64: 1, 384>}, {transform_indices = @transform_5, window_bounds = array<i64: 8, 128>}]} {
    %c0 = arith.constant 0 : index
    %c0_0 = arith.constant 0 : index
    %0 = vector.load %arg1[%c0, %c0_0] : memref<8x16xf32, #tpu.memory_space<vmem>>, vector<8x16xf32>
    %c0_1 = arith.constant 0 : index
    %c0_2 = arith.constant 0 : index
    %1 = vector.load %arg5[%c0_1, %c0_2] : memref<1x384xf32, #tpu.memory_space<vmem>>, vector<1x128xf32>
    %c0_3 = arith.constant 0 : index
    %c128 = arith.constant 128 : index
    %2 = vector.load %arg5[%c0_3, %c128] : memref<1x384xf32, #tpu.memory_space<vmem>>, vector<1x128xf32>
    %c0_4 = arith.constant 0 : index
    %c256 = arith.constant 256 : index
    %3 = vector.load %arg5[%c0_4, %c256] : memref<1x384xf32, #tpu.memory_space<vmem>>, vector<1x128xf32>
    %c0_5 = arith.constant 0 : index
    %c0_6 = arith.constant 0 : index
    %4 = vector.load %arg2[%c0_5, %c0_6] : memref<16x128xf32, #tpu.memory_space<vmem>>, vector<16x128xf32>
    %cst = arith.constant dense<0.000000e+00> : vector<8x128xf32>
    %5 = tpu.matmul %0, %4, %cst {dimension_numbers = #tpu.dot_dimension_numbers<[1], [0], [0], [1], [0, 0, 1, 1], [], []>} : vector<8x16xf32>, vector<16x128xf32>, vector<8x128xf32> -> vector<8x128xf32>
    %6 = vector.broadcast %1 : vector<1x128xf32> to vector<8x128xf32>
    %7 = arith.addf %5, %6 : vector<8x128xf32>
    %8 = math.tanh %7 : vector<8x128xf32>
    %c0_7 = arith.constant 0 : index
    %c0_8 = arith.constant 0 : index
    %9 = vector.load %arg3[%c0_7, %c0_8] : memref<128x128xf32, #tpu.memory_space<vmem>>, vector<128x128xf32>
    %cst_9 = arith.constant dense<0.000000e+00> : vector<8x128xf32>
    %10 = tpu.matmul %8, %9, %cst_9 {dimension_numbers = #tpu.dot_dimension_numbers<[1], [0], [0], [1], [0, 0, 1, 1], [], []>} : vector<8x128xf32>, vector<128x128xf32>, vector<8x128xf32> -> vector<8x128xf32>
    %11 = vector.broadcast %2 : vector<1x128xf32> to vector<8x128xf32>
    %12 = arith.addf %10, %11 : vector<8x128xf32>
    %13 = math.tanh %12 : vector<8x128xf32>
    %c0_10 = arith.constant 0 : index
    %c0_11 = arith.constant 0 : index
    %14 = vector.load %arg4[%c0_10, %c0_11] : memref<128x128xf32, #tpu.memory_space<vmem>>, vector<128x128xf32>
    %cst_12 = arith.constant dense<0.000000e+00> : vector<8x128xf32>
    %15 = tpu.matmul %13, %14, %cst_12 {dimension_numbers = #tpu.dot_dimension_numbers<[1], [0], [0], [1], [0, 0, 1, 1], [], []>} : vector<8x128xf32>, vector<128x128xf32>, vector<8x128xf32> -> vector<8x128xf32>
    %16 = vector.broadcast %3 : vector<1x128xf32> to vector<8x128xf32>
    %17 = arith.addf %15, %16 : vector<8x128xf32>
    %18 = tpu.iota {dimensions = array<i32: 1>} : vector<8x128xi32>
    %c4_i32 = arith.constant 4 : i32
    %19 = vector.broadcast %c4_i32 : i32 to vector<8x128xi32>
    %20 = arith.cmpi slt, %18, %19 : vector<8x128xi32>
    %cst_13 = arith.constant 0xFF800000 : f32
    %21 = vector.broadcast %cst_13 : f32 to vector<8x128xf32>
    %22 = arith.select %20, %17, %21 : vector<8x128xi1>, vector<8x128xf32>
    %cst_14 = arith.constant dense<0xFF800000> : vector<8xf32>
    %23 = vector.multi_reduction <maximumf>, %22, %cst_14 [1] : vector<8x128xf32> to vector<8xf32>
    %24 = vector.shape_cast %23 : vector<8xf32> to vector<8x1xf32>
    %25 = vector.broadcast %24 : vector<8x1xf32> to vector<8x128xf32>
    %26 = arith.subf %22, %25 : vector<8x128xf32>
    %27 = math.exp %26 : vector<8x128xf32>
    %cst_15 = arith.constant dense<0.000000e+00> : vector<8xf32>
    %28 = vector.multi_reduction <add>, %27, %cst_15 [1] : vector<8x128xf32> to vector<8xf32>
    %29 = vector.shape_cast %28 : vector<8xf32> to vector<8x1xf32>
    %30 = tpu.reciprocal %29 {approx = true} : vector<8x1xf32> -> vector<8x1xf32>
    %31 = arith.mulf %29, %30 : vector<8x1xf32>
    %cst_16 = arith.constant 2.000000e+00 : f32
    %32 = vector.broadcast %cst_16 : f32 to vector<8x1xf32>
    %33 = arith.subf %32, %31 : vector<8x1xf32>
    %34 = arith.mulf %30, %33 : vector<8x1xf32>
    %35 = vector.broadcast %34 : vector<8x1xf32> to vector<8x128xf32>
    %36 = arith.mulf %27, %35 : vector<8x128xf32>
    %37 = arith.select %20, %36, %17 : vector<8x128xi1>, vector<8x128xf32>
    %c0_17 = arith.constant 0 : index
    %c0_18 = arith.constant 0 : index
    %38 = vector.load %arg6[%c0_17, %c0_18] : memref<8x128xf32, #tpu.memory_space<vmem>>, vector<8x128xf32>
    tpu.vector_store %arg6[%c0_17, %c0_18], %37 {strides = array<i32>} : memref<8x128xf32, #tpu.memory_space<vmem>>, vector<8x128xf32>,
    return
  }
  func.func @transform_0(%arg0: i32) -> (i32, i32) {
    %c0_i32 = arith.constant 0 : i32
    %c0_i32_0 = arith.constant 0 : i32
    return %arg0, %c0_i32 : i32, i32
  }
  func.func @transform_1(%arg0: i32) -> (i32, i32) {
    %c0_i32 = arith.constant 0 : i32
    %c0_i32_0 = arith.constant 0 : i32
    %c0_i32_1 = arith.constant 0 : i32
    return %c0_i32, %c0_i32_0 : i32, i32
  }
  func.func @transform_2(%arg0: i32) -> (i32, i32) {
    %c0_i32 = arith.constant 0 : i32
    %c0_i32_0 = arith.constant 0 : i32
    %c0_i32_1 = arith.constant 0 : i32
    return %c0_i32, %c0_i32_0 : i32, i32
  }
  func.func @transform_3(%arg0: i32) -> (i32, i32) {
    %c0_i32 = arith.constant 0 : i32
    %c0_i32_0 = arith.constant 0 : i32
    %c0_i32_1 = arith.constant 0 : i32
    return %c0_i32, %c0_i32_0 : i32, i32
  }
  func.func @transform_4(%arg0: i32) -> (i32, i32) {
    %c0_i32 = arith.constant 0 : i32
    %c0_i32_0 = arith.constant 0 : i32
    %c0_i32_1 = arith.constant 0 : i32
    return %c0_i32, %c0_i32_0 : i32, i32
  }
  func.func @transform_5(%arg0: i32) -> (i32, i32) {
    %c0_i32 = arith.constant 0 : i32
    %c0_i32_0 = arith.constant 0 : i32
    return %arg0, %c0_i32 : i32, i32
  }
}

</mosaic_0001>

<llo_original>
// kernel: actor_critic_discrete.1
$region0: #{actor_critic_discrete.1}
  #allocation0 [shape = 'u32[]', space=smem, size = 0x4, offset = 0x4, fixed_abs, tag = 'smem constant byte address 0x4 - core index']
  #allocation1 [shape = 'u32[72,128]{1,0:T(1,128)}', space=vmem, size = 0x9000, scoped, tag = 'internal scratch']
  %s0 = inlined_call_operand.hbm [shape: f32[8,16], index: 0, kind: input, shape index: {}]
  %s1 = inlined_call_operand.hbm [shape: f32[16,128], index: 1, kind: input, shape index: {}]
  %s2 = inlined_call_operand.hbm [shape: f32[128,128], index: 2, kind: input, shape index: {}]
  %s3 = inlined_call_operand.hbm [shape: f32[128,128], index: 3, kind: input, shape index: {}]
  %s4 = inlined_call_operand.vmem [shape: f32[1,384], index: 4, kind: input, shape index: {}]
  %s5 = inlined_call_operand.vmem [shape: f32[8,128], index: 5, kind: output, shape index: {}]
  %s6 = sld [smem:[#allocation0]]
  $region46: #{actor_critic_discrete.1} parent=0
    _
  %s8 = ssub.s32 1, %s6
  %s9 = scalar_select 0, %s8, %s6
  $region1: #{actor_critic_discrete.1} parent=0
    #allocation2 [shape = 'u8[4096]{0}', space=vmem, size = 0x1000, scoped, tag = 'input window, operand 0, single buffered']
    #allocation3 [shape = 's32[1]{0}', space=sflag, size = 0x4, scoped, tag = 'scoped memory for actor_critic_discrete.1']
    #allocation4 [shape = 'u8[8192]{0}', space=vmem, size = 0x2000, scoped, tag = 'input window, operand 1, single buffered']
    #allocation5 [shape = 's32[1]{0}', space=sflag, size = 0x4, scoped, tag = 'scoped memory for actor_critic_discrete.1']
    #allocation6 [shape = 'u8[65536]{0}', space=vmem, size = 0x10000, scoped, tag = 'input window, operand 2, single buffered']
    #allocation7 [shape = 'u8[65536]{0}', space=vmem, size = 0x10000, scoped, tag = 'input window, operand 3, single buffered']
    #allocation8 [shape = 's32[1]{0}', space=sflag, size = 0x4, scoped, tag = 'scoped memory for actor_critic_discrete.1']
    %10 = vsyncpa [#allocation3], 0
    %11 = vsyncpa [#allocation5], 0
    %12 = vsyncpa [#allocation8], 0
    // Predicated region
    $region2: #{actor_critic_discrete.1} parent=1 // pred_check
      _
    $region3: #{actor_critic_discrete.1} parent=1 // pred_check_branch
      %14 = sbr.rel (0) target = $region5
    $region4: #{actor_critic_discrete.1} parent=1 // pred_region
      %16 = vsyncadd [#allocation3], 0
      %s18 = sshll.u32 %s0, 4
      %s19 = int_to_ptr.hbm [resolvable:$true] %s18
      %s20 = sshll.u32 [#allocation2], 4
      %s21 = int_to_ptr.vmem [resolvable:$true] %s20
      %23 = dma.hbm_to_vmem [thread:$0]  %s19, 128, %s21, [#allocation3]
    $region5: #{actor_critic_discrete.1} parent=1 // pred_fallthru
      _
    // Predicated region
    $region6: #{actor_critic_discrete.1} parent=1 // pred_check
      _
    $region7: #{actor_critic_discrete.1} parent=1 // pred_check_branch
      %25 = sbr.rel (0) target = $region9
    $region8: #{actor_critic_discrete.1} parent=1 // pred_region
      %27 = vsyncadd [#allocation5], 0
      %s28 = sshll.u32 %s1, 4
      %s29 = int_to_ptr.hbm [resolvable:$true] %s28
      %s30 = sshll.u32 [#allocation4], 4
      %s31 = int_to_ptr.vmem [resolvable:$true] %s30
      %36 = dma.hbm_to_vmem [thread:$0]  %s29, 256, %s31, [#allocation5], 128, 128, 8
    $region9: #{actor_critic_discrete.1} parent=1 // pred_fallthru
      _
    // Predicated region
    $region10: #{actor_critic_discrete.1} parent=1 // pred_check
      _
    $region11: #{actor_critic_discrete.1} parent=1 // pred_check_branch
      %38 = sbr.rel (0) target = $region13
    $region12: #{actor_critic_discrete.1} parent=1 // pred_region
      %40 = vsyncadd [#allocation5], 0
      %s41 = sshll.u32 %s2, 4
      %s42 = int_to_ptr.hbm [resolvable:$true] %s41
      %s43 = sshll.u32 [#allocation6], 4
      %s44 = int_to_ptr.vmem [resolvable:$true] %s43
      %49 = dma.hbm_to_vmem [thread:$0]  %s42, 2048, %s44, [#allocation5], 128, 128, 8
    $region13: #{actor_critic_discrete.1} parent=1 // pred_fallthru
      _
    // Predicated region
    $region14: #{actor_critic_discrete.1} parent=1 // pred_check
      _
    $region15: #{actor_critic_discrete.1} parent=1 // pred_check_branch
      %51 = sbr.rel (0) target = $region17
    $region16: #{actor_critic_discrete.1} parent=1 // pred_region
      %53 = vsyncadd [#allocation8], 0
      %s54 = sshll.u32 %s3, 4
      %s55 = int_to_ptr.hbm [resolvable:$true] %s54
      %s56 = sshll.u32 [#allocation7], 4
      %s57 = int_to_ptr.vmem [resolvable:$true] %s56
      %62 = dma.hbm_to_vmem [thread:$0]  %s55, 2048, %s57, [#allocation8], 128, 128, 8
    $region17: #{actor_critic_discrete.1} parent=1 // pred_fallthru
      _
    // Predicated region
    $region18: #{actor_critic_discrete.1} parent=1 // pred_check
      _
    $region19: #{actor_critic_discrete.1} parent=1 // pred_check_branch
      %64 = sbr.rel (0) target = $region21
    $region20: #{actor_critic_discrete.1} parent=1 // pred_region
      _
    $region21: #{actor_critic_discrete.1} parent=1 // pred_fallthru
      _
    // Predicated region
    $region22: #{actor_critic_discrete.1} parent=1 // pred_check
      _
    $region23: #{actor_critic_discrete.1} parent=1 // pred_check_branch
      %66 = sbr.rel (0) target = $region25
    $region24: #{actor_critic_discrete.1} parent=1 // pred_region
      %68 = dma.done [#allocation3], 128
    $region25: #{actor_critic_discrete.1} parent=1 // pred_fallthru
      _
    // Predicated region
    $region26: #{actor_critic_discrete.1} parent=1 // pred_check
      _
    $region27: #{actor_critic_discrete.1} parent=1 // pred_check_branch
      %70 = sbr.rel (0) target = $region29
    $region28: #{actor_critic_discrete.1} parent=1 // pred_region
      %72 = dma.done [#allocation5], 256
    $region29: #{actor_critic_discrete.1} parent=1 // pred_fallthru
      _
    // Predicated region
    $region30: #{actor_critic_discrete.1} parent=1 // pred_check
      _
    $region31: #{actor_critic_discrete.1} parent=1 // pred_check_branch
      %74 = sbr.rel (0) target = $region33
    $region32: #{actor_critic_discrete.1} parent=1 // pred_region
      %76 = dma.done [#allocation5], 2048
    $region33: #{actor_critic_discrete.1} parent=1 // pred_fallthru
      _
    // Predicated region
    $region34: #{actor_critic_discrete.1} parent=1 // pred_check
      _
    $region35: #{actor_critic_discrete.1} parent=1 // pred_check_branch
      %78 = sbr.rel (0) target = $region37
    $region36: #{actor_critic_discrete.1} parent=1 // pred_region
      %80 = dma.done [#allocation8], 2048
    $region37: #{actor_critic_discrete.1} parent=1 // pred_fallthru
      _
    %v81 = vld [vmem:[#allocation2] sm:$0xff]
    %v82 = vld [vmem:[%s4] sm:$0x1]
    %v83 = vld [vmem:[%s4 + $0x1] sm:$0x1]
    %v84 = vld [vmem:[%s4 + $0x2] sm:$0x1]
    %v85 = vld [vmem:[#allocation4] sm:$0xff]
    %v86 = vld [vmem:[#allocation4 + $0x8] sm:$0xff]
    %v88 = vperm.slane %v82, 0
    %vm90 = vcmask 130048
    %v92 = vsel %vm90, %v81, 0
    %94 = vmatpush.msra.mxu0 0.0
    %95 = vmatpush.msra.mxu0 0.0
    %96 = vmatpush.msra.mxu0 0.0
    %97 = vmatpush.msra.mxu0 0.0
    %98 = vmatpush.msra.mxu0 0.0
    %99 = vmatpush.msra.mxu0 0.0
    %100 = vmatpush.msra.mxu0 0.0
    %101 = vmatpush.msra.mxu0 0.0
    %102 = vmatpush.msra.mxu0 0.0
    %103 = vmatpush.msra.mxu0 0.0
    %104 = vmatpush.msra.mxu0 0.0
    %105 = vmatpush.msra.mxu0 0.0
    %106 = vmatpush.msra.mxu0 0.0
    %107 = vmatpush.msra.mxu0 0.0
    %108 = vmatpush.msra.mxu0 %v86
    %109 = vmatpush.msra.mxu0 %v85
    %110 = vmatmul.f32.gmra.mxu0 %v92
    %v111 = vpop.f32.mrf.mxu0
    %v112 = vadd.f32 %v88, %v111
    %113 = vdwg.mxu0
    %v114 = vtanh.pop %v112
    %v115 = vld [vmem:[#allocation6] sm:$0xff]
    %v116 = vld [vmem:[#allocation6 + $0x8] sm:$0xff]
    %v117 = vld [vmem:[#allocation6 + $0x10] sm:$0xff]
    %v118 = vld [vmem:[#allocation6 + $0x18] sm:$0xff]
    %v119 = vld [vmem:[#allocation6 + $0x20] sm:$0xff]
    %v120 = vld [vmem:[#allocation6 + $0x28] sm:$0xff]
    %v121 = vld [vmem:[#allocation6 + $0x30] sm:$0xff]
    %v122 = vld [vmem:[#allocation6 + $0x38] sm:$0xff]
    %v123 = vld [vmem:[#allocation6 + $0x40] sm:$0xff]
    %v124 = vld [vmem:[#allocation6 + $0x48] sm:$0xff]
    %v125 = vld [vmem:[#allocation6 + $0x50] sm:$0xff]
    %v126 = vld [vmem:[#allocation6 + $0x58] sm:$0xff]
    %v127 = vld [vmem:[#allocation6 + $0x60] sm:$0xff]
    %v128 = vld [vmem:[#allocation6 + $0x68] sm:$0xff]
    %v129 = vld [vmem:[#allocation6 + $0x70] sm:$0xff]
    %v130 = vld [vmem:[#allocation6 + $0x78] sm:$0xff]
    %v132 = vperm.slane %v83, 0
    %134 = vmatpush.msra.mxu0 %v130
    %135 = vmatpush.msra.mxu0 %v129
    %136 = vmatpush.msra.mxu0 %v128
    %137 = vmatpush.msra.mxu0 %v127
    %138 = vmatpush.msra.mxu0 %v126
    %139 = vmatpush.msra.mxu0 %v125
    %140 = vmatpush.msra.mxu0 %v124
    %141 = vmatpush.msra.mxu0 %v123
    %142 = vmatpush.msra.mxu0 %v122
    %143 = vmatpush.msra.mxu0 %v121
    %144 = vmatpush.msra.mxu0 %v120
    %145 = vmatpush.msra.mxu0 %v119
    %146 = vmatpush.msra.mxu0 %v118
    %147 = vmatpush.msra.mxu0 %v117
    %148 = vmatpush.msra.mxu0 %v116
    %149 = vmatpush.msra.mxu0 %v115
    %150 = vmatmul.f32.gmra.mxu0 %v114
    %v151 = vpop.f32.mrf.mxu0
    %v152 = vadd.f32 %v132, %v151
    %153 = vdwg.mxu0
    %v154 = vtanh.pop %v152
    %v155 = vld [vmem:[#allocation7] sm:$0xff]
    %v156 = vld [vmem:[#allocation7 + $0x8] sm:$0xff]
    %v157 = vld [vmem:[#allocation7 + $0x10] sm:$0xff]
    %v158 = vld [vmem:[#allocation7 + $0x18] sm:$0xff]
    %v159 = vld [vmem:[#allocation7 + $0x20] sm:$0xff]
    %v160 = vld [vmem:[#allocation7 + $0x28] sm:$0xff]
    %v161 = vld [vmem:[#allocation7 + $0x30] sm:$0xff]
    %v162 = vld [vmem:[#allocation7 + $0x38] sm:$0xff]
    %v163 = vld [vmem:[#allocation7 + $0x40] sm:$0xff]
    %v164 = vld [vmem:[#allocation7 + $0x48] sm:$0xff]
    %v165 = vld [vmem:[#allocation7 + $0x50] sm:$0xff]
    %v166 = vld [vmem:[#allocation7 + $0x58] sm:$0xff]
    %v167 = vld [vmem:[#allocation7 + $0x60] sm:$0xff]
    %v168 = vld [vmem:[#allocation7 + $0x68] sm:$0xff]
    %v169 = vld [vmem:[#allocation7 + $0x70] sm:$0xff]
    %v170 = vld [vmem:[#allocation7 + $0x78] sm:$0xff]
    %v172 = vperm.slane %v84, 0
    %174 = vmatpush.msra.mxu0 %v170
    %175 = vmatpush.msra.mxu0 %v169
    %176 = vmatpush.msra.mxu0 %v168
    %177 = vmatpush.msra.mxu0 %v167
    %178 = vmatpush.msra.mxu0 %v166
    %179 = vmatpush.msra.mxu0 %v165
    %180 = vmatpush.msra.mxu0 %v164
    %181 = vmatpush.msra.mxu0 %v163
    %182 = vmatpush.msra.mxu0 %v162
    %183 = vmatpush.msra.mxu0 %v161
    %184 = vmatpush.msra.mxu0 %v160
    %185 = vmatpush.msra.mxu0 %v159
    %186 = vmatpush.msra.mxu0 %v158
    %187 = vmatpush.msra.mxu0 %v157
    %188 = vmatpush.msra.mxu0 %v156
    %189 = vmatpush.msra.mxu0 %v155
    %190 = vmatmul.f32.gmra.mxu0 %v154
    %v191 = vpop.f32.mrf.mxu0
    %v192 = vadd.f32 %v172, %v191
    %193 = vdwg.mxu0
    %v194 = vlaneseq
    %v195 = vand.u32 %v194, 127
    %vm196 = vcmp.lt.s32.totalorder %v195, 4
    %v197 = vsel %vm196, %v192, -inf
    %198 = vmax.xlane.f32.xlu0 %v197
    %v199 = vpop.xlane.xlu0 %198
    %v200 = vsub.f32 %v197, %v199
    %v201 = vmul.f32 %v200, 1.442695
    %v202 = vpow.pop %v201
    %203 = vadd.xlane.f32.xlu0 %v202
    %v204 = vpop.xlane.xlu0 %203
    %v205 = vrcp.pop %v204
    %v206 = vmul.f32 %v204, %v205
    %v207 = vsub.f32 2.0, %v206
    %v208 = vmul.f32 %v205, %v207
    %v209 = vmul.f32 %v202, %v208
    %v210 = vsel %vm196, %v209, %v192
    %211 = vst [vmem:[%s5] sm:$0xff] %v210
    // Predicated region
    $region38: #{actor_critic_discrete.1} parent=1 // pred_check
      _
    $region39: #{actor_critic_discrete.1} parent=1 // pred_check_branch
      %213 = sbr.rel (0) target = $region41
    $region40: #{actor_critic_discrete.1} parent=1 // pred_region
      _
    $region41: #{actor_critic_discrete.1} parent=1 // pred_fallthru
      _
    // Predicated region
    $region42: #{actor_critic_discrete.1} parent=1 // pred_check
      _
    $region43: #{actor_critic_discrete.1} parent=1 // pred_check_branch
      %215 = sbr.rel (0) target = $region45
    $region44: #{actor_critic_discrete.1} parent=1 // pred_region
      _
    $region45: #{actor_critic_discrete.1} parent=1 // pred_fallthru
      _
    %216 = vsyncpa [#allocation3], 1
    %217 = vsyncpa [#allocation5], 1
    %218 = vsyncpa [#allocation8], 1

</llo_original>
